<compile_context>
chip_gen: v7x
topology: tpu7x:2x2x1
jax: 0.10.0
libtpu: 0.0.40
codegen_flags: <defaults>
</compile_context>

<pallas_src>
import jax
import jax.numpy as jnp
from jax.experimental import pallas as pl
from jax.experimental.pallas import tpu as pltpu


def _round_up(x, m):
    return (x + m - 1) // m * m


def _pick_tile(dim, cap, align, prefer):
    """Tile size: multiple of `align`, <= cap, minimizing last-tile padding.

    If the whole (align-rounded) dim fits under the cap, use a single tile —
    for the weight dims this means W is streamed from HBM exactly once.
    Ties prefer `prefer`-aligned (MXU-friendly) and then larger tiles.
    """
    dim_r = _round_up(dim, align)
    if dim_r <= cap:
        return dim_r
    best_key, best_t = None, align
    t = align
    while t <= cap:
        waste = _round_up(dim, t) - dim
        key = (waste, 0 if t % prefer == 0 else 1, -t)
        if best_key is None or key < best_key:
            best_key, best_t = key, t
        t += align
    return best_t


def _linear_kernel_k1(x_ref, w_ref, b_ref, o_ref):
    """Single K step: dot + bias + store.  No accumulator scratch at all."""
    o_ref[...] = (
        jnp.dot(x_ref[...], w_ref[...], preferred_element_type=jnp.float32)
        + b_ref[...]
    ).astype(o_ref.dtype)


def _linear_kernel(x_ref, w_ref, b_ref, o_ref, acc_ref):
    """K-tiled path: f32 accumulator across the (innermost, arbitrary) K axis."""
    k = pl.program_id(2)
    partial = jnp.dot(x_ref[...], w_ref[...], preferred_element_type=jnp.float32)

    @pl.when(k == 0)
    def _():
        acc_ref[...] = partial            # no zero-init store + reload

    @pl.when(k > 0)
    def _():
        acc_ref[...] += partial

    @pl.when(k == pl.num_programs(2) - 1)
    def _():
        # Bias add (f32) + cast once per (i, j) output tile.
        o_ref[...] = (acc_ref[...] + b_ref[...]).astype(o_ref.dtype)


def prepare_classifier_params(w, b, *, compute_dtype=None, tn_max=1024, tk_max=1024):
    """One-time weight preparation (module init, not per forward call).

    w: (n_classes, feat_in)  — nn.Linear weight
    b: (n_classes,)          — nn.Linear bias
    Stores W as a pre-transposed, tile-padded (feat_in_pad, n_classes_pad)
    array in `compute_dtype` and the bias in f32.
    """
    n_classes, feat_in = w.shape
    cdt = jnp.dtype(compute_dtype) if compute_dtype is not None else w.dtype

    tn = _pick_tile(n_classes, tn_max, 128, 256)
    tk = _pick_tile(feat_in, tk_max, 128, 256)
    n_pad = _round_up(n_classes, tn)
    k_pad = _round_up(feat_in, tk)

    w_t = w.T.astype(cdt)                               # (feat_in, n_classes)
    if (k_pad, n_pad) != (feat_in, n_classes):
        w_t = jnp.pad(w_t, ((0, k_pad - feat_in), (0, n_pad - n_classes)))

    b_p = b.astype(jnp.float32)
    if n_pad != n_classes:
        b_p = jnp.pad(b_p, (0, n_pad - n_classes))      # padded cols get bias 0;
    b_p = b_p.reshape(1, n_pad)                         # they are sliced off later.

    return dict(w_t=w_t, b=b_p, feat_in=feat_in, n_classes=n_classes,
                tn=tn, tk=tk, compute_dtype=cdt)


def classifier_forward(x, params, *, tm_max=1024):
    """nn.Linear forward: y = x @ W^T + b, tiled Pallas TPU kernel.

    x: (batch, feat_in).  Returns (batch, n_classes) in x.dtype.
    """
    batch, feat_in = x.shape
    assert feat_in == params["feat_in"]
    out_dtype = x.dtype
    cdt = params["compute_dtype"]
    w_t, b_p = params["w_t"], params["b"]
    tn, tk = params["tn"], params["tk"]
    k_pad, n_pad = w_t.shape
    n_classes = params["n_classes"]

    # M tile as large as the budget allows (ideally one tile covering the whole
    # batch) so the classifier weight is streamed from HBM as few times as possible.
    tm = _pick_tile(batch, tm_max, 8, 256)
    m_pad = _round_up(batch, tm)

    # Expose >= 2 parallel output tiles for dual-TensorCore chips (v7x) when the
    # whole output would otherwise be a single (i, j) tile.
    if (m_pad // tm) * (n_pad // tn) == 1 and tn % 256 == 0:
        tn //= 2

    x_c = x.astype(cdt) if x.dtype != cdt else x
    if (m_pad, k_pad) != (batch, feat_in):
        x_c = jnp.pad(x_c, ((0, m_pad - batch), (0, k_pad - feat_in)))

    grid_m, grid_n, grid_k = m_pad // tm, n_pad // tn, k_pad // tk

    # VMEM budget: double-buffered in/out tiles + f32 accumulator; clamp the
    # declared limit to <= 48 MiB so it is safe on v7x (64 MiB physical) too.
    isz = jnp.dtype(cdt).itemsize
    osz = jnp.dtype(out_dtype).itemsize
    vmem_est = (2 * (tm * tk * isz + tk * tn * isz + tm * tn * osz + tn * 4)
                + tm * tn * 4)
    vmem_limit = int(min(max(2 * vmem_est, 32 * 1024 * 1024), 48 * 1024 * 1024))

    cost = pl.CostEstimate(
        flops=2 * m_pad * n_pad * k_pad,
        transcendentals=0,
        bytes_accessed=(x_c.size * isz + w_t.size * isz + b_p.size * 4
                        + m_pad * n_pad * osz),
    )

    if grid_k == 1:
        kernel = _linear_kernel_k1
        grid = (grid_m, grid_n)
        in_specs = [
            pl.BlockSpec((tm, tk), lambda i, j: (i, 0)),   # x
            pl.BlockSpec((tk, tn), lambda i, j: (0, j)),   # W^T
            pl.BlockSpec((1, tn), lambda i, j: (0, j)),    # bias (f32)
        ]
        out_spec = pl.BlockSpec((tm, tn), lambda i, j: (i, j))
        scratch = []
        dims = ("parallel", "parallel")
    else:
        kernel = _linear_kernel
        grid = (grid_m, grid_n, grid_k)
        in_specs = [
            pl.BlockSpec((tm, tk), lambda i, j, k: (i, k)),   # x
            pl.BlockSpec((tk, tn), lambda i, j, k: (k, j)),   # W^T
            pl.BlockSpec((1, tn), lambda i, j, k: (0, j)),    # bias (f32)
        ]
        out_spec = pl.BlockSpec((tm, tn), lambda i, j, k: (i, j))
        scratch = [pltpu.VMEM((tm, tn), jnp.float32)]
        dims = ("parallel", "parallel", "arbitrary")

    y_pad = pl.pallas_call(
        kernel,
        out_shape=jax.ShapeDtypeStruct((m_pad, n_pad), out_dtype),
        grid_spec=pltpu.PrefetchScalarGridSpec(
            num_scalar_prefetch=0,
            grid=grid,
            in_specs=in_specs,
            out_specs=out_spec,
            scratch_shapes=scratch,
        ),
        compiler_params=pltpu.CompilerParams(
            dimension_semantics=dims,
            vmem_limit_bytes=vmem_limit,
        ),
        cost_estimate=cost,
    )(x_c, w_t, b_p)

    if (m_pad, n_pad) != (batch, n_classes):
        y_pad = y_pad[:batch, :n_classes]
    return y_pad


if __name__ == "__main__":
    # Deterministic synthetic parameters / inputs (small shapes).
    feat_in = 32
    n_classes = 16
    batch = 8

    key = jax.random.PRNGKey(0)
    kx, kw, kb = jax.random.split(key, 3)

    x = jax.random.normal(kx, (batch, feat_in), dtype=jnp.float32)
    # nn.Linear init shapes: weight (n_classes, feat_in), bias (n_classes,)
    bound = 1.0 / (feat_in ** 0.5)
    w = jax.random.uniform(kw, (n_classes, feat_in), jnp.float32, -bound, bound)
    b = jax.random.uniform(kb, (n_classes,), jnp.float32, -bound, bound)

    y_ref = x @ w.T + b

    # f32-operand path.
    params_f32 = prepare_classifier_params(w, b)
    y = classifier_forward(x, params_f32)
    jax.block_until_ready(y)
    assert y.shape == (batch, n_classes)
    assert jnp.allclose(y, y_ref, atol=3e-2, rtol=3e-2), "f32 path mismatch"

    # bf16-operand path (halves HBM bytes for W; f32 accumulate + f32 bias).
    params_bf16 = prepare_classifier_params(w, b, compute_dtype=jnp.bfloat16)
    y_bf16 = classifier_forward(x, params_bf16)
    jax.block_until_ready(y_bf16)
    assert y_bf16.shape == (batch, n_classes)
    assert y_bf16.dtype == x.dtype
    assert jnp.allclose(y_bf16, y_ref, atol=6e-2, rtol=6e-2), "bf16 path mismatch"

    print("KERNEL_OK")
</pallas_src>

<mosaic_0001>
module attributes {stable_mosaic.version = 11 : i64} {
  func.func @_linear_kernel_k1(%arg0: i32, %arg1: i32, %arg2: memref<8x128xf32, #tpu.memory_space<vmem>>, %arg3: memref<128x128xf32, #tpu.memory_space<vmem>>, %arg4: memref<1x128xf32, #tpu.memory_space<vmem>>, %arg5: memref<8x128xf32, #tpu.memory_space<vmem>>) attributes {dimension_semantics = [#tpu.dimension_semantics<parallel>, #tpu.dimension_semantics<parallel>], iteration_bounds = array<i64: 1, 1>, scalar_prefetch = 0 : i64, scratch_operands = 0 : i64, tpu.core_type = #tpu.core_type<tc>, window_params = [{transform_indices = @transform_0, window_bounds = array<i64: 8, 128>}, {transform_indices = @transform_1, window_bounds = array<i64: 128, 128>}, {transform_indices = @transform_2, window_bounds = array<i64: 1, 128>}, {transform_indices = @transform_3, window_bounds = array<i64: 8, 128>}]} {
    %c0 = arith.constant 0 : index
    %c0_0 = arith.constant 0 : index
    %0 = vector.load %arg2[%c0, %c0_0] : memref<8x128xf32, #tpu.memory_space<vmem>>, vector<8x128xf32>
    %c0_1 = arith.constant 0 : index
    %c0_2 = arith.constant 0 : index
    %1 = vector.load %arg3[%c0_1, %c0_2] : memref<128x128xf32, #tpu.memory_space<vmem>>, vector<128x128xf32>
    %cst = arith.constant dense<0.000000e+00> : vector<8x128xf32>
    %2 = tpu.matmul %0, %1, %cst {dimension_numbers = #tpu.dot_dimension_numbers<[1], [0], [0], [1], [0, 0, 1, 1], [], []>} : vector<8x128xf32>, vector<128x128xf32>, vector<8x128xf32> -> vector<8x128xf32>
    %c0_3 = arith.constant 0 : index
    %c0_4 = arith.constant 0 : index
    %3 = vector.load %arg4[%c0_3, %c0_4] : memref<1x128xf32, #tpu.memory_space<vmem>>, vector<1x128xf32>
    %4 = vector.broadcast %3 : vector<1x128xf32> to vector<8x128xf32>
    %5 = arith.addf %2, %4 : vector<8x128xf32>
    %c0_5 = arith.constant 0 : index
    %c0_6 = arith.constant 0 : index
    %6 = vector.load %arg5[%c0_5, %c0_6] : memref<8x128xf32, #tpu.memory_space<vmem>>, vector<8x128xf32>
    tpu.vector_store %arg5[%c0_5, %c0_6], %5 {strides = array<i32>} : memref<8x128xf32, #tpu.memory_space<vmem>>, vector<8x128xf32>,
    return
  }
  func.func @transform_0(%arg0: i32, %arg1: i32) -> (i32, i32) {
    %c0_i32 = arith.constant 0 : i32
    %c0_i32_0 = arith.constant 0 : i32
    return %arg0, %c0_i32 : i32, i32
  }
  func.func @transform_1(%arg0: i32, %arg1: i32) -> (i32, i32) {
    %c0_i32 = arith.constant 0 : i32
    %c0_i32_0 = arith.constant 0 : i32
    return %c0_i32, %arg1 : i32, i32
  }
  func.func @transform_2(%arg0: i32, %arg1: i32) -> (i32, i32) {
    %c0_i32 = arith.constant 0 : i32
    %c0_i32_0 = arith.constant 0 : i32
    return %c0_i32, %arg1 : i32, i32
  }
  func.func @transform_3(%arg0: i32, %arg1: i32) -> (i32, i32) {
    %c0_i32 = arith.constant 0 : i32
    return %arg0, %arg1 : i32, i32
  }
}

</mosaic_0001>

<llo_original>
// kernel: tpu_custom_call.1
$region0: #{tpu_custom_call.1}
  #allocation0 [shape = 'u32[]', space=smem, size = 0x4, offset = 0x4, fixed_abs, tag = 'smem constant byte address 0x4 - core index']
  #allocation1 [shape = 'u32[144,128]{1,0:T(1,128)}', space=vmem, size = 0x12000, scoped, tag = 'internal scratch']
  %s0 = inlined_call_operand.hbm [shape: f32[8,128], index: 0, kind: input, shape index: {}]
  %s1 = inlined_call_operand.hbm [shape: f32[128,128], index: 1, kind: input, shape index: {}]
  %s2 = inlined_call_operand.vmem [shape: f32[1,128], index: 2, kind: input, shape index: {}]
  %s3 = inlined_call_operand.hbm [shape: f32[8,128], index: 3, kind: output, shape index: {}]
  %s4 = sld [smem:[#allocation0]]
  $region30: #{tpu_custom_call.1} parent=0
    _
  %s6 = ssub.s32 1, %s4
  %s7 = scalar_select 0, %s6, %s4
  $region1: #{tpu_custom_call.1} parent=0
    #allocation2 [shape = 'u8[4096]{0}', space=vmem, size = 0x1000, scoped, tag = 'input window, operand 0, single buffered']
    #allocation3 [shape = 's32[1]{0}', space=sflag, size = 0x4, scoped, tag = 'scoped memory for tpu_custom_call.1']
    #allocation4 [shape = 's32[1]{0}', space=sflag, size = 0x4, scoped, tag = 'scoped memory for tpu_custom_call.1']
    #allocation5 [shape = 'u8[65536]{0}', space=vmem, size = 0x10000, scoped, tag = 'input window, operand 1, single buffered']
    #allocation6 [shape = 's32[1]{0}', space=sflag, size = 0x4, scoped, tag = 'scoped memory for tpu_custom_call.1']
    #allocation7 [shape = 'u8[4096]{0}', space=vmem, size = 0x1000, scoped, tag = 'output window, operand 0, single buffered']
    %8 = vsyncpa [#allocation3], 0
    %9 = vsyncpa [#allocation6], 0
    %10 = vsyncpa [#allocation4], 0
    // Predicated region
    $region2: #{tpu_custom_call.1} parent=1 // pred_check
      _
    $region3: #{tpu_custom_call.1} parent=1 // pred_check_branch
      %12 = sbr.rel (0) target = $region5
    $region4: #{tpu_custom_call.1} parent=1 // pred_region
      %s14 = ssub.s32 128, 128
      %15 = vsyncadd [#allocation3], %s14
      %s17 = sshll.u32 [#allocation2], 4
      %s18 = int_to_ptr.vmem [resolvable:$true] %s17
      %20 = dma.hbm_to_vmem [thread:$0]  %s0, 128, %s18, [#allocation3]
    $region5: #{tpu_custom_call.1} parent=1 // pred_fallthru
      _
    // Predicated region
    $region6: #{tpu_custom_call.1} parent=1 // pred_check
      _
    $region7: #{tpu_custom_call.1} parent=1 // pred_check_branch
      %22 = sbr.rel (0) target = $region9
    $region8: #{tpu_custom_call.1} parent=1 // pred_region
      %s24 = ssub.s32 2048, 2048
      %25 = vsyncadd [#allocation6], %s24
      %s26 = sshll.u32 [#allocation5], 4
      %s27 = int_to_ptr.vmem [resolvable:$true] %s26
      %32 = dma.hbm_to_vmem [thread:$0]  %s1, 2048, %s27, [#allocation6], 128, 128, 8
    $region9: #{tpu_custom_call.1} parent=1 // pred_fallthru
      _
    // Predicated region
    $region10: #{tpu_custom_call.1} parent=1 // pred_check
      _
    $region11: #{tpu_custom_call.1} parent=1 // pred_check_branch
      %34 = sbr.rel (0) target = $region13
    $region12: #{tpu_custom_call.1} parent=1 // pred_region
      _
    $region13: #{tpu_custom_call.1} parent=1 // pred_fallthru
      _
    // Predicated region
    $region14: #{tpu_custom_call.1} parent=1 // pred_check
      _
    $region15: #{tpu_custom_call.1} parent=1 // pred_check_branch
      %36 = sbr.rel (0) target = $region17
    $region16: #{tpu_custom_call.1} parent=1 // pred_region
      %37 = dma.done [#allocation3], 128
    $region17: #{tpu_custom_call.1} parent=1 // pred_fallthru
      _
    // Predicated region
    $region18: #{tpu_custom_call.1} parent=1 // pred_check
      _
    $region19: #{tpu_custom_call.1} parent=1 // pred_check_branch
      %39 = sbr.rel (0) target = $region21
    $region20: #{tpu_custom_call.1} parent=1 // pred_region
      %40 = dma.done [#allocation6], 2048
    $region21: #{tpu_custom_call.1} parent=1 // pred_fallthru
      _
    %v41 = vld [vmem:[#allocation2] sm:$0xff]
    %v42 = vld [vmem:[#allocation5] sm:$0xff]
    %v43 = vld [vmem:[#allocation5 + $0x8] sm:$0xff]
    %v44 = vld [vmem:[#allocation5 + $0x10] sm:$0xff]
    %v45 = vld [vmem:[#allocation5 + $0x18] sm:$0xff]
    %v46 = vld [vmem:[#allocation5 + $0x20] sm:$0xff]
    %v47 = vld [vmem:[#allocation5 + $0x28] sm:$0xff]
    %v48 = vld [vmem:[#allocation5 + $0x30] sm:$0xff]
    %v49 = vld [vmem:[#allocation5 + $0x38] sm:$0xff]
    %v50 = vld [vmem:[#allocation5 + $0x40] sm:$0xff]
    %v51 = vld [vmem:[#allocation5 + $0x48] sm:$0xff]
    %v52 = vld [vmem:[#allocation5 + $0x50] sm:$0xff]
    %v53 = vld [vmem:[#allocation5 + $0x58] sm:$0xff]
    %v54 = vld [vmem:[#allocation5 + $0x60] sm:$0xff]
    %v55 = vld [vmem:[#allocation5 + $0x68] sm:$0xff]
    %v56 = vld [vmem:[#allocation5 + $0x70] sm:$0xff]
    %v57 = vld [vmem:[#allocation5 + $0x78] sm:$0xff]
    %v58 = vld [vmem:[%s2] sm:$0x1]
    %v60 = vlaneseq
    %v61 = vshrl.u32 %v60, 7
    %v62 = vsub.s32 0, %v61
    %v63 = vrot.slane %v58, %v62
    %65 = vmatprep.subr.mxu0 0.0
    %66 = vmatpush1.msra.mxu0 %v42
    %67 = vmatprep.subr.mxu0 0.0
    %68 = vmatpush1.msra.mxu0 %v43
    %69 = vmatprep.subr.mxu0 0.0
    %70 = vmatpush1.msra.mxu0 %v44
    %71 = vmatprep.subr.mxu0 0.0
    %72 = vmatpush1.msra.mxu0 %v45
    %73 = vmatprep.subr.mxu0 0.0
    %74 = vmatpush1.msra.mxu0 %v46
    %75 = vmatprep.subr.mxu0 0.0
    %76 = vmatpush1.msra.mxu0 %v47
    %77 = vmatprep.subr.mxu0 0.0
    %78 = vmatpush1.msra.mxu0 %v48
    %79 = vmatprep.subr.mxu0 0.0
    %80 = vmatpush1.msra.mxu0 %v49
    %81 = vmatprep.subr.mxu0 0.0
    %82 = vmatpush1.msra.mxu0 %v50
    %83 = vmatprep.subr.mxu0 0.0
    %84 = vmatpush1.msra.mxu0 %v51
    %85 = vmatprep.subr.mxu0 0.0
    %86 = vmatpush1.msra.mxu0 %v52
    %87 = vmatprep.subr.mxu0 0.0
    %88 = vmatpush1.msra.mxu0 %v53
    %89 = vmatprep.subr.mxu0 0.0
    %90 = vmatpush1.msra.mxu0 %v54
    %91 = vmatprep.subr.mxu0 0.0
    %92 = vmatpush1.msra.mxu0 %v55
    %93 = vmatprep.subr.mxu0 0.0
    %94 = vmatpush1.msra.mxu0 %v56
    %95 = vmatprep.subr.mxu0 0.0
    %96 = vmatpush1.msra.mxu0 %v57
    %97 = vmatprep.subr.mxu0 0.0
    %98 = vmatpush1.msra.mxu0 0.0
    %99 = vmatprep.subr.mxu0 0.0
    %100 = vmatpush1.msra.mxu0 0.0
    %101 = vmatprep.subr.mxu0 0.0
    %102 = vmatpush1.msra.mxu0 0.0
    %103 = vmatprep.subr.mxu0 0.0
    %104 = vmatpush1.msra.mxu0 0.0
    %105 = vmatprep.subr.mxu0 0.0
    %106 = vmatpush1.msra.mxu0 0.0
    %107 = vmatprep.subr.mxu0 0.0
    %108 = vmatpush1.msra.mxu0 0.0
    %109 = vmatprep.subr.mxu0 0.0
    %110 = vmatpush1.msra.mxu0 0.0
    %111 = vmatprep.subr.mxu0 0.0
    %112 = vmatpush1.msra.mxu0 0.0
    %113 = vmatprep.subr.mxu0 0.0
    %114 = vmatpush1.msra.mxu0 0.0
    %115 = vmatprep.subr.mxu0 0.0
    %116 = vmatpush1.msra.mxu0 0.0
    %117 = vmatprep.subr.mxu0 0.0
    %118 = vmatpush1.msra.mxu0 0.0
    %119 = vmatprep.subr.mxu0 0.0
    %120 = vmatpush1.msra.mxu0 0.0
    %121 = vmatprep.subr.mxu0 0.0
    %122 = vmatpush1.msra.mxu0 0.0
    %123 = vmatprep.subr.mxu0 0.0
    %124 = vmatpush1.msra.mxu0 0.0
    %125 = vmatprep.subr.mxu0 0.0
    %126 = vmatpush1.msra.mxu0 0.0
    %127 = vmatprep.subr.mxu0 0.0
    %128 = vmatpush1.msra.mxu0 0.0
    %129 = vmatprep.mubr.f32.mxu0 0.0
    %130 = vmatmul.mubr.f32.gmra.mrb[0].mxu0 %v41
    %v131 = vpop.f32.mrb[0].mxu0
    %v132 = vadd.f32 %v63, %v131
    %v133 = vpop.f32.mrb[0].mxu0
    %134 = vdwg.mxu0
    %135 = vst [vmem:[#allocation7] sm:$0xff] %v132
    // Predicated region
    $region22: #{tpu_custom_call.1} parent=1 // pred_check
      _
    $region23: #{tpu_custom_call.1} parent=1 // pred_check_branch
      %137 = sbr.rel (0) target = $region25
    $region24: #{tpu_custom_call.1} parent=1 // pred_region
      %s139 = ssub.s32 128, 128
      %140 = vsyncadd [#allocation4], %s139
      %s142 = sshll.u32 [#allocation7], 4
      %s143 = int_to_ptr.vmem [resolvable:$true] %s142
      %145 = dma.vmem_to_hbm [thread:$0]  %s143, 128, %s3, [#allocation4]
    $region25: #{tpu_custom_call.1} parent=1 // pred_fallthru
      _
    // Predicated region
    $region26: #{tpu_custom_call.1} parent=1 // pred_check
      _
    $region27: #{tpu_custom_call.1} parent=1 // pred_check_branch
      %147 = sbr.rel (0) target = $region29
    $region28: #{tpu_custom_call.1} parent=1 // pred_region
      %148 = dma.done [#allocation4], 128
    $region29: #{tpu_custom_call.1} parent=1 // pred_fallthru
      _
    %149 = vsyncpa [#allocation3], 1
    %150 = vsyncpa [#allocation6], 1
    %151 = vsyncpa [#allocation4], 1

</llo_original>
